<compile_context>
chip_gen: v7x
topology: tpu7x:2x2x1
jax: 0.10.0
libtpu: 0.0.40
codegen_flags: <defaults>
</compile_context>

<pallas_src>
import jax
import jax.numpy as jnp
from jax.experimental import pallas as pl
from jax.experimental.pallas import tpu as pltpu

_LANES = 128  # TPU lane width; interleave group = 128 // input_features


def _ann_kernel(x_ref, w1_ref, b1_ref, w2_ref, b2_ref, w3_ref, b3_ref, o_ref):
    """One batch tile, all three layers.

    x_ref : [T, 128] f32  -- 16 batch rows interleaved per sublane row
    w*_ref: block-diagonal kron(I_16, W^T), bf16, resident in VMEM
    b*_ref: [1, 16*out_f] f32 (bias tiled per interleaved group)
    o_ref : [T, 32]       -- 16 batch rows x 2 outputs per sublane row
    """
    # In-kernel f32 -> bf16 cast (no bf16 HBM copy of x).
    x = x_ref[...].astype(jnp.bfloat16)

    # Linear(8 -> 20) + ReLU for all 16 interleaved rows at once.
    h1 = jnp.dot(x, w1_ref[...], preferred_element_type=jnp.float32) + b1_ref[...]
    h1 = jnp.maximum(h1, 0.0)

    # Linear(20 -> 10) + ReLU.
    h2 = jnp.dot(h1.astype(jnp.bfloat16), w2_ref[...],
                 preferred_element_type=jnp.float32) + b2_ref[...]
    h2 = jnp.maximum(h2, 0.0)

    # Linear(10 -> 2), no activation.
    out = jnp.dot(h2.astype(jnp.bfloat16), w3_ref[...],
                  preferred_element_type=jnp.float32) + b3_ref[...]
    o_ref[...] = out.astype(o_ref.dtype)


def _choose_tiling(rows, max_tile_rows):
    """rows = number of interleaved [*, 128] rows (each = 16 batch elems)."""
    if rows <= 16:                       # tiny batch: one full-extent block
        return rows, 1
    # Keep >= 2 grid steps so v7x's two TensorCores both get work, then
    # derive the tile from the batch so awkward sizes don't pad a full tile.
    n_steps = max(2, pl.cdiv(rows, max_tile_rows))
    tile = pl.cdiv(rows, n_steps)
    tile = ((tile + 7) // 8) * 8         # sublane multiple
    return tile, pl.cdiv(rows, tile)


def ann_forward(x, params, max_tile_rows=2048, out_dtype=jnp.float32):
    """x: [batch, 8] float32 (row-major, PyTorch convention). Returns [batch, 2]."""
    batch, in_f = x.shape
    group = _LANES // in_f               # 16 batch rows per 128-lane row
    out_f = params["w3"].shape[1] // group

    # Only ragged batches pay a (tiny) pad; the reshape itself is a
    # row-major view, not an HBM pass.
    pad = (-batch) % group
    if pad:
        x = jnp.pad(x, ((0, pad), (0, 0)))
    rows = (batch + pad) // group
    x_rows = x.reshape(rows, group * in_f)          # [rows, 128], free

    tile, grid = _choose_tiling(rows, max_tile_rows)
    full = lambda a: pl.BlockSpec(a.shape, lambda i: (0, 0))

    out_rows = pl.pallas_call(
        _ann_kernel,
        out_shape=jax.ShapeDtypeStruct((rows, group * out_f), out_dtype),
        grid=(grid,),
        in_specs=[
            pl.BlockSpec((tile, group * in_f), lambda i: (i, 0)),
            full(params["w1"]), full(params["b1"]),
            full(params["w2"]), full(params["b2"]),
            full(params["w3"]), full(params["b3"]),
        ],
        out_specs=pl.BlockSpec((tile, group * out_f), lambda i: (i, 0)),
        compiler_params=pltpu.CompilerParams(
            dimension_semantics=("parallel",),
            vmem_limit_bytes=32 * 1024 * 1024),
    )(x_rows, params["w1"], params["b1"], params["w2"], params["b2"],
      params["w3"], params["b3"])

    out = out_rows.reshape(rows * group, out_f)     # free row-major reshape
    return out[:batch] if pad else out


def init_params(key, input_features=8, hidden1=20, hidden2=10, out_features=2):
    """PyTorch-like nn.Linear init: raw [out, in] f32 weights, [out] f32 biases."""
    ks = jax.random.split(key, 6)

    def lin(kw, kb, fan_in, fan_out):
        bound = 1.0 / jnp.sqrt(fan_in)
        w = jax.random.uniform(kw, (fan_out, fan_in), jnp.float32, -bound, bound)
        b = jax.random.uniform(kb, (fan_out,), jnp.float32, -bound, bound)
        return w, b

    w1, b1 = lin(ks[0], ks[1], input_features, hidden1)
    w2, b2 = lin(ks[2], ks[3], hidden1, hidden2)
    w3, b3 = lin(ks[4], ks[5], hidden2, out_features)
    return {"w1": w1, "b1": b1, "w2": w2, "b2": b2, "w3": w3, "b3": b3}


def pack_params(raw):
    """One-time prep: expand weights to block-diagonal kron(I_g, W^T) bf16 so a
    single MXU matmul applies the layer to all g=128//in_f interleaved batch
    rows of a lane-dense [*, 128] tile. Biases are lane-tiled, kept f32."""
    in_f = raw["w1"].shape[1]
    assert _LANES % in_f == 0, "input_features must divide 128"
    g = _LANES // in_f
    eye = jnp.eye(g, dtype=jnp.float32)

    def expand_w(w):                     # [out_f, in_f] -> [g*in_f, g*out_f]
        return jnp.kron(eye, w.T).astype(jnp.bfloat16)

    def expand_b(b):                     # [out_f] -> [1, g*out_f]
        return jnp.tile(b[None, :], (1, g)).astype(jnp.float32)

    return {"w1": expand_w(raw["w1"]), "b1": expand_b(raw["b1"]),
            "w2": expand_w(raw["w2"]), "b2": expand_b(raw["b2"]),
            "w3": expand_w(raw["w3"]), "b3": expand_b(raw["b3"])}


def ann_reference(x, raw):
    """Pure-JAX f32 reference (same math as the PyTorch module)."""
    h1 = jnp.maximum(x @ raw["w1"].T + raw["b1"], 0.0)
    h2 = jnp.maximum(h1 @ raw["w2"].T + raw["b2"], 0.0)
    return h2 @ raw["w3"].T + raw["b3"]


# TODO(synk): save()/load() of the torch checkpoint are host-side I/O, not a kernel concern.

if __name__ == "__main__":
    key = jax.random.PRNGKey(0)
    kp, kx = jax.random.split(key)
    raw = init_params(kp)
    packed = pack_params(raw)

    fwd = jax.jit(ann_forward)

    # Small shape consistent with the module: batch=8, input_features=8.
    batch = 8
    x = jax.random.normal(kx, (batch, 8), jnp.float32)
    out = jax.block_until_ready(fwd(x, packed))
    ref = ann_reference(x, raw)
    assert out.shape == (batch, 2), out.shape
    # bf16 MXU operands with f32 accumulation -> relaxed tolerance vs f32 ref.
    assert jnp.allclose(out, ref, atol=2e-2, rtol=2e-2), "mismatch vs reference (batch=8)"

    # Second check: ragged batch exercising padding + multi-step grid path.
    x2 = jax.random.normal(kx, (300, 8), jnp.float32)
    out2 = jax.block_until_ready(fwd(x2, packed))
    ref2 = ann_reference(x2, raw)
    assert out2.shape == (300, 2), out2.shape
    assert jnp.allclose(out2, ref2, atol=2e-2, rtol=2e-2), "mismatch vs reference (batch=300)"

    print("KERNEL_OK")
</pallas_src>

<mosaic_0001>
module attributes {stable_mosaic.version = 11 : i64} {
  func.func @_ann_kernel(%arg0: i32, %arg1: memref<1x128xf32, #tpu.memory_space<vmem>>, %arg2: memref<128x320xbf16, #tpu.memory_space<vmem>>, %arg3: memref<1x320xf32, #tpu.memory_space<vmem>>, %arg4: memref<320x160xbf16, #tpu.memory_space<vmem>>, %arg5: memref<1x160xf32, #tpu.memory_space<vmem>>, %arg6: memref<160x32xbf16, #tpu.memory_space<vmem>>, %arg7: memref<1x32xf32, #tpu.memory_space<vmem>>, %arg8: memref<1x32xf32, #tpu.memory_space<vmem>>) attributes {dimension_semantics = [#tpu.dimension_semantics<parallel>], iteration_bounds = array<i64: 1>, scalar_prefetch = 0 : i64, scratch_operands = 0 : i64, tpu.core_type = #tpu.core_type<tc>, window_params = [{transform_indices = @transform_0, window_bounds = array<i64: 1, 128>}, {pipeline_mode = #tpu.pipeline_mode<synchronous>, transform_indices = @transform_1, window_bounds = array<i64: 128, 320>}, {pipeline_mode = #tpu.pipeline_mode<synchronous>, transform_indices = @transform_2, window_bounds = array<i64: 1, 320>}, {pipeline_mode = #tpu.pipeline_mode<synchronous>, transform_indices = @transform_3, window_bounds = array<i64: 320, 160>}, {pipeline_mode = #tpu.pipeline_mode<synchronous>, transform_indices = @transform_4, window_bounds = array<i64: 1, 160>}, {pipeline_mode = #tpu.pipeline_mode<synchronous>, transform_indices = @transform_5, window_bounds = array<i64: 160, 32>}, {pipeline_mode = #tpu.pipeline_mode<synchronous>, transform_indices = @transform_6, window_bounds = array<i64: 1, 32>}, {transform_indices = @transform_7, window_bounds = array<i64: 1, 32>}]} {
    %c0 = arith.constant 0 : index
    %c0_0 = arith.constant 0 : index
    %0 = vector.load %arg1[%c0, %c0_0] : memref<1x128xf32, #tpu.memory_space<vmem>>, vector<1x128xf32>
    %1 = arith.truncf %0 : vector<1x128xf32> to vector<1x128xbf16>
    %c0_1 = arith.constant 0 : index
    %c0_2 = arith.constant 0 : index
    %2 = vector.load %arg2[%c0_1, %c0_2] : memref<128x320xbf16, #tpu.memory_space<vmem>>, vector<128x320xbf16>
    %cst = arith.constant dense<0.000000e+00> : vector<1x320xf32>
    %3 = tpu.matmul %1, %2, %cst {dimension_numbers = #tpu.dot_dimension_numbers<[1], [0], [0], [1], [0, 0, 1, 1], [], []>} : vector<1x128xbf16>, vector<128x320xbf16>, vector<1x320xf32> -> vector<1x320xf32>
    %c0_3 = arith.constant 0 : index
    %c0_4 = arith.constant 0 : index
    %4 = vector.load %arg3[%c0_3, %c0_4] : memref<1x320xf32, #tpu.memory_space<vmem>>, vector<1x320xf32>
    %5 = arith.addf %3, %4 : vector<1x320xf32>
    %cst_5 = arith.constant 0.000000e+00 : f32
    %6 = vector.broadcast %cst_5 : f32 to vector<1x320xf32>
    %7 = arith.maximumf %5, %6 : vector<1x320xf32>
    %8 = arith.truncf %7 : vector<1x320xf32> to vector<1x320xbf16>
    %c0_6 = arith.constant 0 : index
    %c0_7 = arith.constant 0 : index
    %9 = vector.load %arg4[%c0_6, %c0_7] : memref<320x160xbf16, #tpu.memory_space<vmem>>, vector<320x160xbf16>
    %cst_8 = arith.constant dense<0.000000e+00> : vector<1x160xf32>
    %10 = tpu.matmul %8, %9, %cst_8 {dimension_numbers = #tpu.dot_dimension_numbers<[1], [0], [0], [1], [0, 0, 1, 1], [], []>} : vector<1x320xbf16>, vector<320x160xbf16>, vector<1x160xf32> -> vector<1x160xf32>
    %c0_9 = arith.constant 0 : index
    %c0_10 = arith.constant 0 : index
    %11 = vector.load %arg5[%c0_9, %c0_10] : memref<1x160xf32, #tpu.memory_space<vmem>>, vector<1x160xf32>
    %12 = arith.addf %10, %11 : vector<1x160xf32>
    %cst_11 = arith.constant 0.000000e+00 : f32
    %13 = vector.broadcast %cst_11 : f32 to vector<1x160xf32>
    %14 = arith.maximumf %12, %13 : vector<1x160xf32>
    %15 = arith.truncf %14 : vector<1x160xf32> to vector<1x160xbf16>
    %c0_12 = arith.constant 0 : index
    %c0_13 = arith.constant 0 : index
    %16 = vector.load %arg6[%c0_12, %c0_13] : memref<160x32xbf16, #tpu.memory_space<vmem>>, vector<160x32xbf16>
    %cst_14 = arith.constant dense<0.000000e+00> : vector<1x32xf32>
    %17 = tpu.matmul %15, %16, %cst_14 {dimension_numbers = #tpu.dot_dimension_numbers<[1], [0], [0], [1], [0, 0, 1, 1], [], []>} : vector<1x160xbf16>, vector<160x32xbf16>, vector<1x32xf32> -> vector<1x32xf32>
    %c0_15 = arith.constant 0 : index
    %c0_16 = arith.constant 0 : index
    %18 = vector.load %arg7[%c0_15, %c0_16] : memref<1x32xf32, #tpu.memory_space<vmem>>, vector<1x32xf32>
    %19 = arith.addf %17, %18 : vector<1x32xf32>
    %c0_17 = arith.constant 0 : index
    %c0_18 = arith.constant 0 : index
    %20 = vector.load %arg8[%c0_17, %c0_18] : memref<1x32xf32, #tpu.memory_space<vmem>>, vector<1x32xf32>
    tpu.vector_store %arg8[%c0_17, %c0_18], %19 {strides = array<i32>} : memref<1x32xf32, #tpu.memory_space<vmem>>, vector<1x32xf32>,
    return
  }
  func.func @transform_0(%arg0: i32) -> (i32, i32) {
    %c0_i32 = arith.constant 0 : i32
    %c0_i32_0 = arith.constant 0 : i32
    return %arg0, %c0_i32 : i32, i32
  }
  func.func @transform_1(%arg0: i32) -> (i32, i32) {
    %c0_i32 = arith.constant 0 : i32
    %c0_i32_0 = arith.constant 0 : i32
    %c0_i32_1 = arith.constant 0 : i32
    return %c0_i32, %c0_i32_0 : i32, i32
  }
  func.func @transform_2(%arg0: i32) -> (i32, i32) {
    %c0_i32 = arith.constant 0 : i32
    %c0_i32_0 = arith.constant 0 : i32
    %c0_i32_1 = arith.constant 0 : i32
    return %c0_i32, %c0_i32_0 : i32, i32
  }
  func.func @transform_3(%arg0: i32) -> (i32, i32) {
    %c0_i32 = arith.constant 0 : i32
    %c0_i32_0 = arith.constant 0 : i32
    %c0_i32_1 = arith.constant 0 : i32
    return %c0_i32, %c0_i32_0 : i32, i32
  }
  func.func @transform_4(%arg0: i32) -> (i32, i32) {
    %c0_i32 = arith.constant 0 : i32
    %c0_i32_0 = arith.constant 0 : i32
    %c0_i32_1 = arith.constant 0 : i32
    return %c0_i32, %c0_i32_0 : i32, i32
  }
  func.func @transform_5(%arg0: i32) -> (i32, i32) {
    %c0_i32 = arith.constant 0 : i32
    %c0_i32_0 = arith.constant 0 : i32
    %c0_i32_1 = arith.constant 0 : i32
    return %c0_i32, %c0_i32_0 : i32, i32
  }
  func.func @transform_6(%arg0: i32) -> (i32, i32) {
    %c0_i32 = arith.constant 0 : i32
    %c0_i32_0 = arith.constant 0 : i32
    %c0_i32_1 = arith.constant 0 : i32
    return %c0_i32, %c0_i32_0 : i32, i32
  }
  func.func @transform_7(%arg0: i32) -> (i32, i32) {
    %c0_i32 = arith.constant 0 : i32
    %c0_i32_0 = arith.constant 0 : i32
    return %arg0, %c0_i32 : i32, i32
  }
}

</mosaic_0001>

<llo_original>
// kernel: ann_forward.1
$region0: #{ann_forward.1}
  #allocation0 [shape = 'u32[]', space=smem, size = 0x4, offset = 0x4, fixed_abs, tag = 'smem constant byte address 0x4 - core index']
  #allocation1 [shape = 'u32[144,128]{1,0:T(1,128)}', space=vmem, size = 0x12000, scoped, tag = 'internal scratch']
  %s0 = inlined_call_operand.vmem [shape: f32[1,128], index: 0, kind: input, shape index: {}]
  %s1 = inlined_call_operand.vmem [shape: bf16[128,320], index: 1, kind: input, shape index: {}]
  %s2 = inlined_call_operand.vmem [shape: f32[1,320], index: 2, kind: input, shape index: {}]
  %s3 = inlined_call_operand.vmem [shape: bf16[320,160], index: 3, kind: input, shape index: {}]
  %s4 = inlined_call_operand.vmem [shape: f32[1,160], index: 4, kind: input, shape index: {}]
  %s5 = inlined_call_operand.vmem [shape: bf16[160,32], index: 5, kind: input, shape index: {}]
  %s6 = inlined_call_operand.vmem [shape: f32[1,32], index: 6, kind: input, shape index: {}]
  %s7 = inlined_call_operand.vmem [shape: f32[1,32], index: 7, kind: output, shape index: {}]
  %s8 = sld [smem:[#allocation0]]
  $region38: #{ann_forward.1} parent=0
    _
  %s10 = ssub.s32 1, %s8
  %s11 = scalar_select 0, %s10, %s8
  // Predicated region
  $region2: #{ann_forward.1} parent=0 // pred_check
    _
  $region3: #{ann_forward.1} parent=0 // pred_check_branch
    %13 = sbr.rel (0) target = $region5
  $region4: #{ann_forward.1} parent=0 // pred_region
    _
  $region5: #{ann_forward.1} parent=0 // pred_fallthru
    _
  // Predicated region
  $region6: #{ann_forward.1} parent=0 // pred_check
    _
  $region7: #{ann_forward.1} parent=0 // pred_check_branch
    %15 = sbr.rel (0) target = $region9
  $region8: #{ann_forward.1} parent=0 // pred_region
    _
  $region9: #{ann_forward.1} parent=0 // pred_fallthru
    _
  // Predicated region
  $region10: #{ann_forward.1} parent=0 // pred_check
    _
  $region11: #{ann_forward.1} parent=0 // pred_check_branch
    %17 = sbr.rel (0) target = $region13
  $region12: #{ann_forward.1} parent=0 // pred_region
    _
  $region13: #{ann_forward.1} parent=0 // pred_fallthru
    _
  // Predicated region
  $region14: #{ann_forward.1} parent=0 // pred_check
    _
  $region15: #{ann_forward.1} parent=0 // pred_check_branch
    %19 = sbr.rel (0) target = $region17
  $region16: #{ann_forward.1} parent=0 // pred_region
    _
  $region17: #{ann_forward.1} parent=0 // pred_fallthru
    _
  // Predicated region
  $region18: #{ann_forward.1} parent=0 // pred_check
    _
  $region19: #{ann_forward.1} parent=0 // pred_check_branch
    %21 = sbr.rel (0) target = $region21
  $region20: #{ann_forward.1} parent=0 // pred_region
    _
  $region21: #{ann_forward.1} parent=0 // pred_fallthru
    _
  // Predicated region
  $region22: #{ann_forward.1} parent=0 // pred_check
    _
  $region23: #{ann_forward.1} parent=0 // pred_check_branch
    %23 = sbr.rel (0) target = $region25
  $region24: #{ann_forward.1} parent=0 // pred_region
    _
  $region25: #{ann_forward.1} parent=0 // pred_fallthru
    _
  // Predicated region
  $region26: #{ann_forward.1} parent=0 // pred_check
    _
  $region27: #{ann_forward.1} parent=0 // pred_check_branch
    %25 = sbr.rel (0) target = $region29
  $region28: #{ann_forward.1} parent=0 // pred_region
    _
  $region29: #{ann_forward.1} parent=0 // pred_fallthru
    _
  %v27 = vld [vmem:[%s0] sm:$0x1]
  %v28 = vpack.c.bf16 %v27, %v27
  %v29 = vld [vmem:[%s1] sm:$0xff]
  %v30 = vld [vmem:[%s1 + $0x8] sm:$0xf]
  %v31 = vld [vmem:[%s1 + $0xc] sm:$0xff]
  %v32 = vld [vmem:[%s1 + $0x14] sm:$0xf]
  %v33 = vld [vmem:[%s1 + $0x18] sm:$0xff]
  %v34 = vld [vmem:[%s1 + $0x20] sm:$0xf]
  %v35 = vld [vmem:[%s1 + $0x24] sm:$0xff]
  %v36 = vld [vmem:[%s1 + $0x2c] sm:$0xf]
  %v37 = vld [vmem:[%s1 + $0x30] sm:$0xff]
  %v38 = vld [vmem:[%s1 + $0x38] sm:$0xf]
  %v39 = vld [vmem:[%s1 + $0x3c] sm:$0xff]
  %v40 = vld [vmem:[%s1 + $0x44] sm:$0xf]
  %v41 = vld [vmem:[%s1 + $0x48] sm:$0xff]
  %v42 = vld [vmem:[%s1 + $0x50] sm:$0xf]
  %v43 = vld [vmem:[%s1 + $0x54] sm:$0xff]
  %v44 = vld [vmem:[%s1 + $0x5c] sm:$0xf]
  %v45 = vld [vmem:[%s1 + $0x60] sm:$0xff]
  %v46 = vld [vmem:[%s1 + $0x68] sm:$0xf]
  %v47 = vld [vmem:[%s1 + $0x6c] sm:$0xff]
  %v48 = vld [vmem:[%s1 + $0x74] sm:$0xf]
  %v49 = vld [vmem:[%s1 + $0x78] sm:$0xff]
  %v50 = vld [vmem:[%s1 + $0x80] sm:$0xf]
  %v51 = vld [vmem:[%s1 + $0x84] sm:$0xff]
  %v52 = vld [vmem:[%s1 + $0x8c] sm:$0xf]
  %v53 = vld [vmem:[%s1 + $0x90] sm:$0xff]
  %v54 = vld [vmem:[%s1 + $0x98] sm:$0xf]
  %v55 = vld [vmem:[%s1 + $0x9c] sm:$0xff]
  %v56 = vld [vmem:[%s1 + $0xa4] sm:$0xf]
  %v57 = vld [vmem:[%s1 + $0xa8] sm:$0xff]
  %v58 = vld [vmem:[%s1 + $0xb0] sm:$0xf]
  %v59 = vld [vmem:[%s1 + $0xb4] sm:$0xff]
  %v60 = vld [vmem:[%s1 + $0xbc] sm:$0xf]
  %v61 = vld [vmem:[%s2] sm:$0x7]
  %v94 = vunpack.c.l.b16 %v29
  %v95 = vunpack.c.h.b16 %v29
  %v96 = vunpack.c.l.b16 %v30
  %v97 = vunpack.c.l.b16 %v31
  %v98 = vunpack.c.h.b16 %v31
  %v99 = vunpack.c.l.b16 %v32
  %v100 = vunpack.c.l.b16 %v33
  %v101 = vunpack.c.h.b16 %v33
  %v102 = vunpack.c.l.b16 %v34
  %v103 = vunpack.c.l.b16 %v35
  %v104 = vunpack.c.h.b16 %v35
  %v105 = vunpack.c.l.b16 %v36
  %v106 = vunpack.c.l.b16 %v37
  %v107 = vunpack.c.h.b16 %v37
  %v108 = vunpack.c.l.b16 %v38
  %v109 = vunpack.c.l.b16 %v39
  %v110 = vunpack.c.h.b16 %v39
  %v111 = vunpack.c.l.b16 %v40
  %v112 = vunpack.c.l.b16 %v41
  %v113 = vunpack.c.h.b16 %v41
  %v114 = vunpack.c.l.b16 %v42
  %v115 = vunpack.c.l.b16 %v43
  %v116 = vunpack.c.h.b16 %v43
  %v117 = vunpack.c.l.b16 %v44
  %v118 = vunpack.c.l.b16 %v45
  %v119 = vunpack.c.h.b16 %v45
  %v120 = vunpack.c.l.b16 %v46
  %v121 = vunpack.c.l.b16 %v47
  %v122 = vunpack.c.h.b16 %v47
  %v123 = vunpack.c.l.b16 %v48
  %v124 = vunpack.c.l.b16 %v49
  %v125 = vunpack.c.h.b16 %v49
  %v126 = vunpack.c.l.b16 %v50
  %v127 = vunpack.c.l.b16 %v51
  %v128 = vunpack.c.h.b16 %v51
  %v129 = vunpack.c.l.b16 %v52
  %v130 = vunpack.c.l.b16 %v53
  %v131 = vunpack.c.h.b16 %v53
  %v132 = vunpack.c.l.b16 %v54
  %v133 = vunpack.c.l.b16 %v55
  %v134 = vunpack.c.h.b16 %v55
  %v135 = vunpack.c.l.b16 %v56
  %v136 = vunpack.c.l.b16 %v57
  %v137 = vunpack.c.h.b16 %v57
  %v138 = vunpack.c.l.b16 %v58
  %v139 = vunpack.c.l.b16 %v59
  %v140 = vunpack.c.h.b16 %v59
  %v141 = vunpack.c.l.b16 %v60
  %v142 = vpack.c.b16 %v97, %v94
  %v143 = vpack.c.b16 %v98, %v95
  %v144 = vpack.c.b16 %v99, %v96
  %v145 = vpack.c.b16 %v103, %v100
  %v146 = vpack.c.b16 %v104, %v101
  %v147 = vpack.c.b16 %v105, %v102
  %v148 = vpack.c.b16 %v109, %v106
  %v149 = vpack.c.b16 %v110, %v107
  %v150 = vpack.c.b16 %v111, %v108
  %v151 = vpack.c.b16 %v115, %v112
  %v152 = vpack.c.b16 %v116, %v113
  %v153 = vpack.c.b16 %v117, %v114
  %v154 = vpack.c.b16 %v121, %v118
  %v155 = vpack.c.b16 %v122, %v119
  %v156 = vpack.c.b16 %v123, %v120
  %v157 = vpack.c.b16 %v127, %v124
  %v158 = vpack.c.b16 %v128, %v125
  %v159 = vpack.c.b16 %v129, %v126
  %v160 = vpack.c.b16 %v133, %v130
  %v161 = vpack.c.b16 %v134, %v131
  %v162 = vpack.c.b16 %v135, %v132
  %v163 = vpack.c.b16 %v139, %v136
  %v164 = vpack.c.b16 %v140, %v137
  %v165 = vpack.c.b16 %v141, %v138
  %v191 = vlaneseq
  %v192 = vshrl.u32 %v191, 7
  %v193 = vsub.s32 0, %v192
  %v194 = vrot.slane %v61, %v193
  %v195 = vlaneseq
  %v196 = vshrl.u32 %v195, 7
  %v197 = vsub.s32 1, %v196
  %v198 = vrot.slane %v61, %v197
  %v199 = vlaneseq
  %v200 = vshrl.u32 %v199, 7
  %v201 = vsub.s32 2, %v200
  %v202 = vrot.slane %v61, %v201
  %206 = vmatprep.subr.bf16.mxu0 %v143
  %207 = vmatpush1.bf16.msra.mxu0 %v142
  %208 = vmatprep.subr.bf16.mxu0 %v146
  %209 = vmatpush1.bf16.msra.mxu0 %v145
  %210 = vmatprep.subr.bf16.mxu0 %v149
  %211 = vmatpush1.bf16.msra.mxu0 %v148
  %212 = vmatprep.subr.bf16.mxu0 %v152
  %213 = vmatpush1.bf16.msra.mxu0 %v151
  %214 = vmatprep.subr.bf16.mxu0 %v155
  %215 = vmatpush1.bf16.msra.mxu0 %v154
  %216 = vmatprep.subr.bf16.mxu0 %v158
  %217 = vmatpush1.bf16.msra.mxu0 %v157
  %218 = vmatprep.subr.bf16.mxu0 %v161
  %219 = vmatpush1.bf16.msra.mxu0 %v160
  %220 = vmatprep.subr.bf16.mxu0 %v164
  %221 = vmatpush1.bf16.msra.mxu0 %v163
  %222 = vmatprep.subr.bf16.mxu0 0
  %223 = vmatpush1.bf16.msra.mxu0 0
  %224 = vmatprep.subr.bf16.mxu0 0
  %225 = vmatpush1.bf16.msra.mxu0 0
  %226 = vmatprep.subr.bf16.mxu0 0
  %227 = vmatpush1.bf16.msra.mxu0 0
  %228 = vmatprep.subr.bf16.mxu0 0
  %229 = vmatpush1.bf16.msra.mxu0 0
  %230 = vmatprep.subr.bf16.mxu0 0
  %231 = vmatpush1.bf16.msra.mxu0 0
  %232 = vmatprep.subr.bf16.mxu0 0
  %233 = vmatpush1.bf16.msra.mxu0 0
  %234 = vmatprep.subr.bf16.mxu0 0
  %235 = vmatpush1.bf16.msra.mxu0 0
  %236 = vmatprep.subr.bf16.mxu0 0
  %237 = vmatpush1.bf16.msra.mxu0 0
  %238 = vmatprep.mubr.bf16.mxu0 0
  %239 = vmatmul.mubr.bf16.gmra.mrb[0].mxu0 %v28
  %v240 = vpop.f32.mrb[0].mxu0
  %v241 = vadd.f32 %v194, %v240
  %v242 = vpop.f32.mrb[0].mxu0
  %v243 = vadd.f32 %v198, %v242
  %v244 = vpop.f32.mrb[0].mxu0
  %v245 = vpop.f32.mrb[0].mxu0
  %246 = vdwg.mxu0
  %247 = vmatprep.subr.bf16.mxu0 0
  %248 = vmatpush1.bf16.msra.mxu0 %v144
  %249 = vmatprep.subr.bf16.mxu0 0
  %250 = vmatpush1.bf16.msra.mxu0 %v147
  %251 = vmatprep.subr.bf16.mxu0 0
  %252 = vmatpush1.bf16.msra.mxu0 %v150
  %253 = vmatprep.subr.bf16.mxu0 0
  %254 = vmatpush1.bf16.msra.mxu0 %v153
  %255 = vmatprep.subr.bf16.mxu0 0
  %256 = vmatpush1.bf16.msra.mxu0 %v156
  %257 = vmatprep.subr.bf16.mxu0 0
  %258 = vmatpush1.bf16.msra.mxu0 %v159
  %259 = vmatprep.subr.bf16.mxu0 0
  %260 = vmatpush1.bf16.msra.mxu0 %v162
  %261 = vmatprep.subr.bf16.mxu0 0
  %262 = vmatpush1.bf16.msra.mxu0 %v165
  %263 = vmatprep.subr.bf16.mxu0 0
  %264 = vmatpush1.bf16.msra.mxu0 0
  %265 = vmatprep.subr.bf16.mxu0 0
  %266 = vmatpush1.bf16.msra.mxu0 0
  %267 = vmatprep.subr.bf16.mxu0 0
  %268 = vmatpush1.bf16.msra.mxu0 0
  %269 = vmatprep.subr.bf16.mxu0 0
  %270 = vmatpush1.bf16.msra.mxu0 0
  %271 = vmatprep.subr.bf16.mxu0 0
  %272 = vmatpush1.bf16.msra.mxu0 0
  %273 = vmatprep.subr.bf16.mxu0 0
  %274 = vmatpush1.bf16.msra.mxu0 0
  %275 = vmatprep.subr.bf16.mxu0 0
  %276 = vmatpush1.bf16.msra.mxu0 0
  %277 = vmatprep.subr.bf16.mxu0 0
  %278 = vmatpush1.bf16.msra.mxu0 0
  %279 = vmatprep.mubr.bf16.mxu0 0
  %280 = vmatmul.mubr.bf16.gmra.mrb[0].mxu0 %v28
  %v281 = vpop.f32.mrb[0].mxu0
  %v282 = vadd.f32 %v202, %v281
  %v283 = vpop.f32.mrb[0].mxu0
  %v284 = vpop.f32.mrb[0].mxu0
  %v285 = vpop.f32.mrb[0].mxu0
  %286 = vdwg.mxu0
  %v287 = vmax.f32 %v241, 0.0
  %v288 = vmax.f32 %v243, 0.0
  %v289 = vmax.f32 %v282, 0.0
  %v290 = vpack.c.bf16 %v287, %v287
  %v291 = vpack.c.bf16 %v288, %v288
  %v292 = vpack.c.bf16 %v289, %v289
  %v293 = vld [vmem:[%s3] sm:$0xff]
  %v294 = vld [vmem:[%s3 + $0x8] sm:$0xff]
  %v295 = vld [vmem:[%s3 + $0x10] sm:$0xff]
  %v296 = vld [vmem:[%s3 + $0x18] sm:$0xff]
  %v297 = vld [vmem:[%s3 + $0x20] sm:$0xff]
  %v298 = vld [vmem:[%s3 + $0x28] sm:$0xff]
  %v299 = vld [vmem:[%s3 + $0x30] sm:$0xff]
  %v300 = vld [vmem:[%s3 + $0x38] sm:$0xff]
  %v301 = vld [vmem:[%s3 + $0x40] sm:$0xff]
  %v302 = vld [vmem:[%s3 + $0x48] sm:$0xff]
  %v303 = vld [vmem:[%s3 + $0x50] sm:$0xff]
  %v304 = vld [vmem:[%s3 + $0x58] sm:$0xff]
  %v305 = vld [vmem:[%s3 + $0x60] sm:$0xff]
  %v306 = vld [vmem:[%s3 + $0x68] sm:$0xff]
  %v307 = vld [vmem:[%s3 + $0x70] sm:$0xff]
  %v308 = vld [vmem:[%s3 + $0x78] sm:$0xff]
  %v309 = vld [vmem:[%s3 + $0x80] sm:$0xff]
  %v310 = vld [vmem:[%s3 + $0x88] sm:$0xff]
  %v311 = vld [vmem:[%s3 + $0x90] sm:$0xff]
  %v312 = vld [vmem:[%s3 + $0x98] sm:$0xff]
  %v313 = vld [vmem:[%s3 + $0xa0] sm:$0xff]
  %v314 = vld [vmem:[%s3 + $0xa8] sm:$0xff]
  %v315 = vld [vmem:[%s3 + $0xb0] sm:$0xff]
  %v316 = vld [vmem:[%s3 + $0xb8] sm:$0xff]
  %v317 = vld [vmem:[%s3 + $0xc0] sm:$0xff]
  %v318 = vld [vmem:[%s3 + $0xc8] sm:$0xff]
  %v319 = vld [vmem:[%s3 + $0xd0] sm:$0xff]
  %v320 = vld [vmem:[%s3 + $0xd8] sm:$0xff]
  %v321 = vld [vmem:[%s3 + $0xe0] sm:$0xff]
  %v322 = vld [vmem:[%s3 + $0xe8] sm:$0xff]
  %v323 = vld [vmem:[%s3 + $0xf0] sm:$0xff]
  %v324 = vld [vmem:[%s3 + $0xf8] sm:$0xff]
  %v325 = vld [vmem:[%s3 + $0x100] sm:$0xff]
  %v326 = vld [vmem:[%s3 + $0x108] sm:$0xff]
  %v327 = vld [vmem:[%s3 + $0x110] sm:$0xff]
  %v328 = vld [vmem:[%s3 + $0x118] sm:$0xff]
  %v329 = vld [vmem:[%s3 + $0x120] sm:$0xff]
  %v330 = vld [vmem:[%s3 + $0x128] sm:$0xff]
  %v331 = vld [vmem:[%s3 + $0x130] sm:$0xff]
  %v332 = vld [vmem:[%s3 + $0x138] sm:$0xff]
  %v333 = vld [vmem:[%s4] sm:$0x3]
  %v374 = vunpack.c.l.b16 %v293
  %v375 = vunpack.c.h.b16 %v293
  %v376 = vunpack.c.l.b16 %v294
  %v377 = vunpack.c.h.b16 %v294
  %v378 = vunpack.c.l.b16 %v295
  %v379 = vunpack.c.h.b16 %v295
  %v380 = vunpack.c.l.b16 %v296
  %v381 = vunpack.c.h.b16 %v296
  %v382 = vunpack.c.l.b16 %v297
  %v383 = vunpack.c.h.b16 %v297
  %v384 = vunpack.c.l.b16 %v298
  %v385 = vunpack.c.h.b16 %v298
  %v386 = vunpack.c.l.b16 %v299
  %v387 = vunpack.c.h.b16 %v299
  %v388 = vunpack.c.l.b16 %v300
  %v389 = vunpack.c.h.b16 %v300
  %v390 = vunpack.c.l.b16 %v301
  %v391 = vunpack.c.h.b16 %v301
  %v392 = vunpack.c.l.b16 %v302
  %v393 = vunpack.c.h.b16 %v302
  %v394 = vunpack.c.l.b16 %v303
  %v395 = vunpack.c.h.b16 %v303
  %v396 = vunpack.c.l.b16 %v304
  %v397 = vunpack.c.h.b16 %v304
  %v398 = vunpack.c.l.b16 %v305
  %v399 = vunpack.c.h.b16 %v305
  %v400 = vunpack.c.l.b16 %v306
  %v401 = vunpack.c.h.b16 %v306
  %v402 = vunpack.c.l.b16 %v307
  %v403 = vunpack.c.h.b16 %v307
  %v404 = vunpack.c.l.b16 %v308
  %v405 = vunpack.c.h.b16 %v308
  %v406 = vunpack.c.l.b16 %v309
  %v407 = vunpack.c.h.b16 %v309
  %v408 = vunpack.c.l.b16 %v310
  %v409 = vunpack.c.h.b16 %v310
  %v410 = vunpack.c.l.b16 %v311
  %v411 = vunpack.c.h.b16 %v311
  %v412 = vunpack.c.l.b16 %v312
  %v413 = vunpack.c.h.b16 %v312
  %v414 = vunpack.c.l.b16 %v313
  %v415 = vunpack.c.h.b16 %v313
  %v416 = vunpack.c.l.b16 %v314
  %v417 = vunpack.c.h.b16 %v314
  %v418 = vunpack.c.l.b16 %v315
  %v419 = vunpack.c.h.b16 %v315
  %v420 = vunpack.c.l.b16 %v316
  %v421 = vunpack.c.h.b16 %v316
  %v422 = vunpack.c.l.b16 %v317
  %v423 = vunpack.c.h.b16 %v317
  %v424 = vunpack.c.l.b16 %v318
  %v425 = vunpack.c.h.b16 %v318
  %v426 = vunpack.c.l.b16 %v319
  %v427 = vunpack.c.h.b16 %v319
  %v428 = vunpack.c.l.b16 %v320
  %v429 = vunpack.c.h.b16 %v320
  %v430 = vunpack.c.l.b16 %v321
  %v431 = vunpack.c.h.b16 %v321
  %v432 = vunpack.c.l.b16 %v322
  %v433 = vunpack.c.h.b16 %v322
  %v434 = vunpack.c.l.b16 %v323
  %v435 = vunpack.c.h.b16 %v323
  %v436 = vunpack.c.l.b16 %v324
  %v437 = vunpack.c.h.b16 %v324
  %v438 = vunpack.c.l.b16 %v325
  %v439 = vunpack.c.h.b16 %v325
  %v440 = vunpack.c.l.b16 %v326
  %v441 = vunpack.c.h.b16 %v326
  %v442 = vunpack.c.l.b16 %v327
  %v443 = vunpack.c.h.b16 %v327
  %v444 = vunpack.c.l.b16 %v328
  %v445 = vunpack.c.h.b16 %v328
  %v446 = vunpack.c.l.b16 %v329
  %v447 = vunpack.c.h.b16 %v329
  %v448 = vunpack.c.l.b16 %v330
  %v449 = vunpack.c.h.b16 %v330
  %v450 = vunpack.c.l.b16 %v331
  %v451 = vunpack.c.h.b16 %v331
  %v452 = vunpack.c.l.b16 %v332
  %v453 = vunpack.c.h.b16 %v332
  %v454 = vpack.c.b16 %v376, %v374
  %v455 = vpack.c.b16 %v377, %v375
  %v456 = vpack.c.b16 %v380, %v378
  %v457 = vpack.c.b16 %v381, %v379
  %v458 = vpack.c.b16 %v384, %v382
  %v459 = vpack.c.b16 %v385, %v383
  %v460 = vpack.c.b16 %v388, %v386
  %v461 = vpack.c.b16 %v389, %v387
  %v462 = vpack.c.b16 %v392, %v390
  %v463 = vpack.c.b16 %v393, %v391
  %v464 = vpack.c.b16 %v396, %v394
  %v465 = vpack.c.b16 %v397, %v395
  %v466 = vpack.c.b16 %v400, %v398
  %v467 = vpack.c.b16 %v401, %v399
  %v468 = vpack.c.b16 %v404, %v402
  %v469 = vpack.c.b16 %v405, %v403
  %v470 = vpack.c.b16 %v408, %v406
  %v471 = vpack.c.b16 %v409, %v407
  %v472 = vpack.c.b16 %v412, %v410
  %v473 = vpack.c.b16 %v413, %v411
  %v474 = vpack.c.b16 %v416, %v414
  %v475 = vpack.c.b16 %v417, %v415
  %v476 = vpack.c.b16 %v420, %v418
  %v477 = vpack.c.b16 %v421, %v419
  %v478 = vpack.c.b16 %v424, %v422
  %v479 = vpack.c.b16 %v425, %v423
  %v480 = vpack.c.b16 %v428, %v426
  %v481 = vpack.c.b16 %v429, %v427
  %v482 = vpack.c.b16 %v432, %v430
  %v483 = vpack.c.b16 %v433, %v431
  %v484 = vpack.c.b16 %v436, %v434
  %v485 = vpack.c.b16 %v437, %v435
  %v486 = vpack.c.b16 %v440, %v438
  %v487 = vpack.c.b16 %v441, %v439
  %v488 = vpack.c.b16 %v444, %v442
  %v489 = vpack.c.b16 %v445, %v443
  %v490 = vpack.c.b16 %v448, %v446
  %v491 = vpack.c.b16 %v449, %v447
  %v492 = vpack.c.b16 %v452, %v450
  %v493 = vpack.c.b16 %v453, %v451
  %v535 = vlaneseq
  %v536 = vshrl.u32 %v535, 7
  %v537 = vsub.s32 0, %v536
  %v538 = vrot.slane %v333, %v537
  %v539 = vlaneseq
  %v540 = vshrl.u32 %v539, 7
  %v541 = vsub.s32 1, %v540
  %v542 = vrot.slane %v333, %v541
  %vm545 = vcmask 523264
  %v547 = vsel %vm545, %v292, 0
  %549 = vmatprep.subr.bf16.mxu0 %v455
  %550 = vmatpush1.bf16.msra.mxu0 %v454
  %551 = vmatprep.subr.bf16.mxu0 %v457
  %552 = vmatpush1.bf16.msra.mxu0 %v456
  %553 = vmatprep.subr.bf16.mxu0 %v459
  %554 = vmatpush1.bf16.msra.mxu0 %v458
  %555 = vmatprep.subr.bf16.mxu0 %v461
  %556 = vmatpush1.bf16.msra.mxu0 %v460
  %557 = vmatprep.subr.bf16.mxu0 %v463
  %558 = vmatpush1.bf16.msra.mxu0 %v462
  %559 = vmatprep.subr.bf16.mxu0 %v465
  %560 = vmatpush1.bf16.msra.mxu0 %v464
  %561 = vmatprep.subr.bf16.mxu0 %v467
  %562 = vmatpush1.bf16.msra.mxu0 %v466
  %563 = vmatprep.subr.bf16.mxu0 %v469
  %564 = vmatpush1.bf16.msra.mxu0 %v468
  %565 = vmatprep.subr.bf16.mxu0 %v471
  %566 = vmatpush1.bf16.msra.mxu0 %v470
  %567 = vmatprep.subr.bf16.mxu0 %v473
  %568 = vmatpush1.bf16.msra.mxu0 %v472
  %569 = vmatprep.subr.bf16.mxu0 %v475
  %570 = vmatpush1.bf16.msra.mxu0 %v474
  %571 = vmatprep.subr.bf16.mxu0 %v477
  %572 = vmatpush1.bf16.msra.mxu0 %v476
  %573 = vmatprep.subr.bf16.mxu0 %v479
  %574 = vmatpush1.bf16.msra.mxu0 %v478
  %575 = vmatprep.subr.bf16.mxu0 %v481
  %576 = vmatpush1.bf16.msra.mxu0 %v480
  %577 = vmatprep.subr.bf16.mxu0 %v483
  %578 = vmatpush1.bf16.msra.mxu0 %v482
  %579 = vmatprep.subr.bf16.mxu0 %v485
  %580 = vmatpush1.bf16.msra.mxu0 %v484
  %581 = vmatprep.mubr.bf16.mxu0 %v291
  %582 = vmatmul.mubr.bf16.gmra.mrb[0].mxu0 %v290
  %v583 = vpop.f32.mrb[0].mxu0
  %v584 = vadd.f32 %v538, %v583
  %v585 = vpop.f32.mrb[0].mxu0
  %v586 = vadd.f32 %v542, %v585
  %v587 = vpop.f32.mrb[0].mxu0
  %v588 = vpop.f32.mrb[0].mxu0
  %589 = vdwg.mxu0
  %590 = vmatprep.subr.bf16.mxu0 %v487
  %591 = vmatpush1.bf16.msra.mxu0 %v486
  %592 = vmatprep.subr.bf16.mxu0 %v489
  %593 = vmatpush1.bf16.msra.mxu0 %v488
  %594 = vmatprep.subr.bf16.mxu0 %v491
  %595 = vmatpush1.bf16.msra.mxu0 %v490
  %596 = vmatprep.subr.bf16.mxu0 %v493
  %597 = vmatpush1.bf16.msra.mxu0 %v492
  %598 = vmatprep.subr.bf16.mxu0 0
  %599 = vmatpush1.bf16.msra.mxu0 0
  %600 = vmatprep.subr.bf16.mxu0 0
  %601 = vmatpush1.bf16.msra.mxu0 0
  %602 = vmatprep.subr.bf16.mxu0 0
  %603 = vmatpush1.bf16.msra.mxu0 0
  %604 = vmatprep.subr.bf16.mxu0 0
  %605 = vmatpush1.bf16.msra.mxu0 0
  %606 = vmatprep.subr.bf16.mxu0 0
  %607 = vmatpush1.bf16.msra.mxu0 0
  %608 = vmatprep.subr.bf16.mxu0 0
  %609 = vmatpush1.bf16.msra.mxu0 0
  %610 = vmatprep.subr.bf16.mxu0 0
  %611 = vmatpush1.bf16.msra.mxu0 0
  %612 = vmatprep.subr.bf16.mxu0 0
  %613 = vmatpush1.bf16.msra.mxu0 0
  %614 = vmatprep.subr.bf16.mxu0 0
  %615 = vmatpush1.bf16.msra.mxu0 0
  %616 = vmatprep.subr.bf16.mxu0 0
  %617 = vmatpush1.bf16.msra.mxu0 0
  %618 = vmatprep.subr.bf16.mxu0 0
  %619 = vmatpush1.bf16.msra.mxu0 0
  %620 = vmatprep.subr.bf16.mxu0 0
  %621 = vmatpush1.bf16.msra.mxu0 0
  %622 = vmatprep.mubr.bf16.mxu0 0
  %623 = vmatmul.mubr.bf16.gmra.mrb[0].mxu0 %v547
  %v624 = vpop.f32.mrb[0].mxu0
  %v625 = vadd.f32 %v584, %v624
  %v626 = vpop.f32.mrb[0].mxu0
  %v627 = vadd.f32 %v586, %v626
  %v628 = vpop.f32.mrb[0].mxu0
  %v629 = vpop.f32.mrb[0].mxu0
  %630 = vdwg.mxu0
  %v631 = vmax.f32 %v625, 0.0
  %v632 = vmax.f32 %v627, 0.0
  %v633 = vpack.c.bf16 %v631, %v631
  %v634 = vpack.c.bf16 %v632, %v632
  %v635 = vld [vmem:[%s5] sm:$0xf]
  %v636 = vld [vmem:[%s5 + $0x4] sm:$0xf]
  %v637 = vld [vmem:[%s5 + $0x8] sm:$0xf]
  %v638 = vld [vmem:[%s5 + $0xc] sm:$0xf]
  %v639 = vld [vmem:[%s5 + $0x10] sm:$0xf]
  %v640 = vld [vmem:[%s5 + $0x14] sm:$0xf]
  %v641 = vld [vmem:[%s5 + $0x18] sm:$0xf]
  %v642 = vld [vmem:[%s5 + $0x1c] sm:$0xf]
  %v643 = vld [vmem:[%s5 + $0x20] sm:$0xf]
  %v644 = vld [vmem:[%s5 + $0x24] sm:$0xf]
  %v645 = vld [vmem:[%s5 + $0x28] sm:$0xf]
  %v646 = vld [vmem:[%s5 + $0x2c] sm:$0xf]
  %v647 = vld [vmem:[%s5 + $0x30] sm:$0xf]
  %v648 = vld [vmem:[%s5 + $0x34] sm:$0xf]
  %v649 = vld [vmem:[%s5 + $0x38] sm:$0xf]
  %v650 = vld [vmem:[%s5 + $0x3c] sm:$0xf]
  %v651 = vld [vmem:[%s5 + $0x40] sm:$0xf]
  %v652 = vld [vmem:[%s5 + $0x44] sm:$0xf]
  %v653 = vld [vmem:[%s5 + $0x48] sm:$0xf]
  %v654 = vld [vmem:[%s5 + $0x4c] sm:$0xf]
  %v655 = vld [vmem:[%s6] sm:$0x1]
  %v676 = vunpack.c.l.b16 %v635
  %v677 = vunpack.c.l.b16 %v636
  %v678 = vunpack.c.l.b16 %v637
  %v679 = vunpack.c.l.b16 %v638
  %v680 = vunpack.c.l.b16 %v639
  %v681 = vunpack.c.l.b16 %v640
  %v682 = vunpack.c.l.b16 %v641
  %v683 = vunpack.c.l.b16 %v642
  %v684 = vunpack.c.l.b16 %v643
  %v685 = vunpack.c.l.b16 %v644
  %v686 = vunpack.c.l.b16 %v645
  %v687 = vunpack.c.l.b16 %v646
  %v688 = vunpack.c.l.b16 %v647
  %v689 = vunpack.c.l.b16 %v648
  %v690 = vunpack.c.l.b16 %v649
  %v691 = vunpack.c.l.b16 %v650
  %v692 = vunpack.c.l.b16 %v651
  %v693 = vunpack.c.l.b16 %v652
  %v694 = vunpack.c.l.b16 %v653
  %v695 = vunpack.c.l.b16 %v654
  %v696 = vpack.c.b16 %v677, %v676
  %v697 = vpack.c.b16 %v679, %v678
  %v698 = vpack.c.b16 %v681, %v680
  %v699 = vpack.c.b16 %v683, %v682
  %v700 = vpack.c.b16 %v685, %v684
  %v701 = vpack.c.b16 %v687, %v686
  %v702 = vpack.c.b16 %v689, %v688
  %v703 = vpack.c.b16 %v691, %v690
  %v704 = vpack.c.b16 %v693, %v692
  %v705 = vpack.c.b16 %v695, %v694
  %vm716 = vcmask 261120
  %v718 = vsel %vm716, %v634, 0
  %720 = vmatprep.subr.bf16.mxu0 0
  %721 = vmatpush1.bf16.msra.mxu0 %v696
  %722 = vmatprep.subr.bf16.mxu0 0
  %723 = vmatpush1.bf16.msra.mxu0 %v697
  %724 = vmatprep.subr.bf16.mxu0 0
  %725 = vmatpush1.bf16.msra.mxu0 %v698
  %726 = vmatprep.subr.bf16.mxu0 0
  %727 = vmatpush1.bf16.msra.mxu0 %v699
  %728 = vmatprep.subr.bf16.mxu0 0
  %729 = vmatpush1.bf16.msra.mxu0 %v700
  %730 = vmatprep.subr.bf16.mxu0 0
  %731 = vmatpush1.bf16.msra.mxu0 %v701
  %732 = vmatprep.subr.bf16.mxu0 0
  %733 = vmatpush1.bf16.msra.mxu0 %v702
  %734 = vmatprep.subr.bf16.mxu0 0
  %735 = vmatpush1.bf16.msra.mxu0 %v703
  %736 = vmatprep.subr.bf16.mxu0 0
  %737 = vmatpush1.bf16.msra.mxu0 %v704
  %738 = vmatprep.subr.bf16.mxu0 0
  %739 = vmatpush1.bf16.msra.mxu0 %v705
  %740 = vmatprep.subr.bf16.mxu0 0
  %741 = vmatpush1.bf16.msra.mxu0 0
  %742 = vmatprep.subr.bf16.mxu0 0
  %743 = vmatpush1.bf16.msra.mxu0 0
  %744 = vmatprep.subr.bf16.mxu0 0
  %745 = vmatpush1.bf16.msra.mxu0 0
  %746 = vmatprep.subr.bf16.mxu0 0
  %747 = vmatpush1.bf16.msra.mxu0 0
  %748 = vmatprep.subr.bf16.mxu0 0
  %749 = vmatpush1.bf16.msra.mxu0 0
  %750 = vmatprep.subr.bf16.mxu0 0
  %751 = vmatpush1.bf16.msra.mxu0 0
  %752 = vmatprep.mubr.bf16.mxu0 %v718
  %753 = vmatmul.mubr.bf16.gmra.mrb[0].mxu0 %v633
  %v754 = vpop.f32.mrb[0].mxu0
  %v755 = vadd.f32 %v655, %v754
  %v756 = vpop.f32.mrb[0].mxu0
  %v757 = vpop.f32.mrb[0].mxu0
  %v758 = vpop.f32.mrb[0].mxu0
  %759 = vdwg.mxu0
  %vm760 = vcmask 253952
  %761 = vst.msk [vmem:[%s7] sm:$0x1] %vm760, %v755
  // Predicated region
  $region30: #{ann_forward.1} parent=0 // pred_check
    _
  $region31: #{ann_forward.1} parent=0 // pred_check_branch
    %763 = sbr.rel (0) target = $region33
  $region32: #{ann_forward.1} parent=0 // pred_region
    _
  $region33: #{ann_forward.1} parent=0 // pred_fallthru
    _
  // Predicated region
  $region34: #{ann_forward.1} parent=0 // pred_check
    _
  $region35: #{ann_forward.1} parent=0 // pred_check_branch
    %765 = sbr.rel (0) target = $region37
  $region36: #{ann_forward.1} parent=0 // pred_region
    _
  $region37: #{ann_forward.1} parent=0 // pred_fallthru
    _

</llo_original>
